<compile_context>
chip_gen: v6e
topology: v6e:2x2x1
jax: 0.10.0
libtpu: 0.0.40
codegen_flags: <defaults>
</compile_context>

<pallas_src>
import jax
import jax.numpy as jnp
from jax import lax
from jax.experimental import pallas as pl
from jax.experimental.pallas import tpu as pltpu


# --------------------------------------------------------------------------- #
# Kernel
# --------------------------------------------------------------------------- #
def _downsample1d_kernel(y_ref, h_ref, w12_ref, w0_ref, b_ref, o_ref):
    """One (batch-tile, time-tile) step of the stride-2 conv.

    y_ref  : (Bt, Lt, 2C)  pair rows of this tile; row t = (x[2T], x[2T+1]),
                           T = tile_start + t (channels-last).
    h_ref  : (Bt, 8,  2C)  the 8 pair rows just before this tile; row 7 is the
                           left-halo pair (x[2*T0-2], x[2*T0-1]).  Only used for
                           time tiles i > 0; zeros substituted at i == 0.
    w12_ref: (2C, C)       taps k=1,2 stacked on the contraction dim, (in, out).
    w0_ref : (C, C)        tap k=0, (in, out).
    b_ref  : (1, C)        bias, float32.
    o_ref  : (Bt, Lt, C)   out[t] = x[2T-1] W0 + x[2T] W1 + x[2T+1] W2 + b.
    """
    bt, lt, c2 = y_ref.shape
    c = o_ref.shape[-1]
    i = pl.program_id(1)

    y = y_ref[...]                                   # (Bt, Lt, 2C)
    y2 = y.reshape(bt * lt, c2)                      # free merge (Lt % 8 == 0)

    # x[2T+1] of the previous output row == x[2T-1] of this row.  Realign with a
    # sublane roll (XLU slot, ~free) instead of a misaligned-start slice, then
    # patch each sample's row 0 with the halo row (or zeros at sequence start,
    # which implements PyTorch's left padding=1).
    odd = y2[:, c:]                                  # (Bt*Lt, C) = x[2T+1]
    prev = pltpu.roll(odd, shift=1, axis=0).reshape(bt, lt, c)
    halo_odd = h_ref[:, 7:8, :][:, :, c:]            # (Bt, 1, C) = x[2*T0 - 1]
    halo_odd = jnp.where(i > 0, halo_odd, jnp.zeros_like(halo_odd))
    t_idx = lax.broadcasted_iota(jnp.int32, (bt, lt, c), 1)
    prev = jnp.where(t_idx == 0, halo_odd, prev)     # (Bt, Lt, C) = x[2T-1]

    # Two dense MXU matmuls over all Bt*Lt rows at once, f32 accumulation.
    acc = jnp.dot(y2, w12_ref[...], preferred_element_type=jnp.float32)
    acc = acc + jnp.dot(prev.reshape(bt * lt, c), w0_ref[...],
                        preferred_element_type=jnp.float32)
    acc = acc + b_ref[...]                           # (1, C) f32 broadcast
    o_ref[...] = acc.reshape(bt, lt, c).astype(o_ref.dtype)


# --------------------------------------------------------------------------- #
# Spec / tiling helpers
# --------------------------------------------------------------------------- #
def _resident_spec(shape, single_buffer):
    """BlockSpec for an operand whose index_map is constant (weights / bias).

    When single_buffer is True, request one VMEM buffer instead of the default
    two (the operand is never re-fetched) -- saves ~3*C^2*esize bytes of VMEM
    headroom, which matters on v7x's 64 MiB.  Gracefully degrades on JAX
    versions without BlockSpec(pipeline_mode=...).
    """
    idx = lambda b, i: (0,) * len(shape)
    if single_buffer and hasattr(pl, "Buffered"):
        try:
            return pl.BlockSpec(shape, idx, pipeline_mode=pl.Buffered(1))
        except TypeError:
            pass
    return pl.BlockSpec(shape, idx)


def _compiler_params(vmem_limit_bytes):
    cls = getattr(pltpu, "CompilerParams", None) or getattr(
        pltpu, "TPUCompilerParams", None)
    if cls is None:                       # very old JAX: fall back to defaults
        return None
    return cls(dimension_semantics=("parallel", "parallel"),
               vmem_limit_bytes=int(vmem_limit_bytes))


def _choose_tiles(batch, c, l_out, itemsize, batch_tile, time_tile):
    """Pick (Bt, Lt) so double-buffered activation tiles stay around <= 8 MiB."""
    bt = int(batch_tile) if batch_tile is not None else max(1, min(batch, 8))
    if time_tile is not None:
        lt = int(time_tile)
    else:
        act_budget = 8 * 1024 * 1024
        per_row = 2 * bt * 3 * c * itemsize          # (2C in + C out) * 2 bufs
        lt = max(8, min(act_budget // max(per_row, 1), 2048))
    lt = min(lt, pl.cdiv(l_out, 8) * 8)              # never larger than needed
    lt = max(8, (lt // 8) * 8)                       # sublane-aligned
    return bt, lt


# --------------------------------------------------------------------------- #
# Public entry points
# --------------------------------------------------------------------------- #
def pack_downsample1d_params(weight, bias, compute_dtype=None):
    """Pack Conv1d(dim, dim, 3, 2, 1) params ONCE at module init.

    weight: (C, C, 3) (out_ch, in_ch, tap); bias: (C,).
    Returns (w0, w12, bias2d) in (in, out) orientation:
      w12 = [W1; W2] (2C, C) -- contracted against a (x[2t], x[2t+1]) pair row
      w0  =  W0      (C,  C) -- contracted against x[2t-1]
    """
    c_out, c_in, k = weight.shape
    assert k == 3 and c_out == c_in, "Downsample1d is Conv1d(dim, dim, 3, 2, 1)"
    cdt = compute_dtype if compute_dtype is not None else weight.dtype
    w = weight.astype(cdt)
    w0 = jnp.transpose(w[:, :, 0])
    w12 = jnp.concatenate(
        [jnp.transpose(w[:, :, 1]), jnp.transpose(w[:, :, 2])], axis=0)
    bias2 = bias.astype(jnp.float32).reshape(1, c_out)
    return w0, w12, bias2


def downsample1d_nlc(x_nlc, params, *, out_dtype=None,
                     batch_tile=None, time_tile=None):
    """Channels-last fast path: x (B, L, C) -> (B, L_out, C); no layout passes."""
    w0, w12, bias2 = params
    b, l, c = x_nlc.shape
    assert w0.shape == (c, c) and w12.shape == (2 * c, c), "params mismatch"
    cdt = w0.dtype
    if out_dtype is None:
        out_dtype = x_nlc.dtype
    l_out = (l - 1) // 2 + 1

    if l % 2:                      # right zero pad one step only when L is odd
        x_nlc = jnp.pad(x_nlc, ((0, 0), (0, 1), (0, 0)))
    p = x_nlc.shape[1] // 2
    # Free pair packing (row-major reshape): y[:, t, :] = (x[2t], x[2t+1]).
    y = x_nlc.astype(cdt).reshape(b, p, 2 * c)

    esz = jnp.dtype(cdt).itemsize
    bt, lt = _choose_tiles(b, c, l_out, esz, batch_tile, time_tile)
    grid = (pl.cdiv(b, bt), pl.cdiv(l_out, lt))

    single_buffer_weights = c >= 256
    n_wbuf = 1 if single_buffer_weights else 2
    tile_bytes = (bt * lt * 2 * c + bt * 8 * 2 * c) * esz \
        + bt * lt * c * jnp.dtype(out_dtype).itemsize
    weight_bytes = 3 * c * c * esz + 4 * c
    vmem_est = 2 * tile_bytes + n_wbuf * weight_bytes + (4 << 20)
    vmem_limit = min(max(vmem_est, 16 << 20), 64 << 20)   # v7x-safe cap

    out = pl.pallas_call(
        _downsample1d_kernel,
        out_shape=jax.ShapeDtypeStruct((b, l_out, c), out_dtype),
        grid=grid,
        in_specs=[
            # main pair rows of this time tile
            pl.BlockSpec((bt, lt, 2 * c), lambda bi, ti: (bi, ti, 0)),
            # 8 pair rows ending just before this tile (row 7 = left halo);
            # clamped to block 0 at ti == 0 where the kernel substitutes zeros.
            pl.BlockSpec(
                (bt, 8, 2 * c),
                lambda bi, ti: (bi, jnp.maximum(ti * (lt // 8) - 1, 0), 0)),
            _resident_spec((2 * c, c), single_buffer_weights),
            _resident_spec((c, c), single_buffer_weights),
            _resident_spec((1, c), single_buffer_weights),
        ],
        out_specs=pl.BlockSpec((bt, lt, c), lambda bi, ti: (bi, ti, 0)),
        compiler_params=_compiler_params(vmem_limit),
    )(y, y, w12, w0, bias2)
    return out


def downsample1d(x_ncl, weight, bias, *, compute_dtype=None,
                 batch_tile=None, time_tile=None):
    """PyTorch-layout entry point: x (B, C, L) -> (B, C, L_out).

    The two transposes below are the only wrapper HBM passes (each fuses with
    the adjacent cast/reshape under jit).  A model that keeps activations
    channels-last should call downsample1d_nlc directly and pay none.
    """
    params = pack_downsample1d_params(weight, bias, compute_dtype=compute_dtype)
    x_nlc = jnp.transpose(x_ncl, (0, 2, 1))
    out_nlc = downsample1d_nlc(x_nlc, params, out_dtype=x_ncl.dtype,
                               batch_tile=batch_tile, time_tile=time_tile)
    return jnp.transpose(out_nlc, (0, 2, 1))


# --------------------------------------------------------------------------- #
# Reference + test
# --------------------------------------------------------------------------- #
def _reference(x_ncl, weight, bias):
    """Pure-JAX reference: PyTorch Conv1d(dim, dim, 3, stride=2, padding=1)."""
    y = lax.conv_general_dilated(
        x_ncl, weight, window_strides=(2,), padding=[(1, 1)],
        dimension_numbers=("NCH", "OIH", "NCH"))
    return y + bias[None, :, None]


if __name__ == "__main__":
    key = jax.random.PRNGKey(0)

    def check(b, dim, l, *, compute_dtype=None, time_tile=None,
              atol=1e-4, rtol=1e-4):
        kx, kw, kb = jax.random.split(
            jax.random.fold_in(key, b * 100000 + dim * 1000 + l), 3)
        x = jax.random.normal(kx, (b, dim, l), jnp.float32)
        w = jax.random.normal(kw, (dim, dim, 3), jnp.float32) * 0.1
        bb = jax.random.normal(kb, (dim,), jnp.float32) * 0.1
        fn = jax.jit(lambda xx, ww, bbb: downsample1d(
            xx, ww, bbb, compute_dtype=compute_dtype, time_tile=time_tile))
        out = jax.block_until_ready(fn(x, w, bb))
        ref = _reference(x, w, bb)
        assert out.shape == ref.shape, (out.shape, ref.shape)
        err = float(jnp.max(jnp.abs(out - ref)))
        assert jnp.allclose(out, ref, atol=atol, rtol=rtol), \
            f"max abs err {err} at shape {(b, dim, l)} dtype {compute_dtype}"

    # Module-sized test shapes: batch=2, dim=4, length=16 (single grid step).
    check(2, 4, 16)
    # Multi time-tile grid: exercises the halo row, odd length (right pad) and
    # a ragged (masked) last tile.
    check(3, 8, 37, time_tile=8)
    # bf16 operands / f32 accumulation fast path (v6e/v7x); looser tolerance.
    check(2, 4, 16, compute_dtype=jnp.bfloat16, atol=5e-2, rtol=5e-2)

    print("KERNEL_OK")
</pallas_src>

<mosaic_0001>
module attributes {stable_mosaic.version = 11 : i64} {
  func.func @_downsample1d_kernel(%arg0: i32, %arg1: i32, %arg2: memref<2x8x8xf32, #tpu.memory_space<vmem>>, %arg3: memref<2x8x8xf32, #tpu.memory_space<vmem>>, %arg4: memref<8x4xf32, #tpu.memory_space<vmem>>, %arg5: memref<4x4xf32, #tpu.memory_space<vmem>>, %arg6: memref<1x4xf32, #tpu.memory_space<vmem>>, %arg7: memref<2x8x4xf32, #tpu.memory_space<vmem>>) attributes {dimension_semantics = [#tpu.dimension_semantics<parallel>, #tpu.dimension_semantics<parallel>], iteration_bounds = array<i64: 1, 1>, scalar_prefetch = 0 : i64, scratch_operands = 0 : i64, tpu.core_type = #tpu.core_type<tc>, window_params = [{transform_indices = @transform_0, window_bounds = array<i64: 2, 8, 8>}, {transform_indices = @transform_1, window_bounds = array<i64: 2, 8, 8>}, {pipeline_mode = #tpu.pipeline_mode<synchronous>, transform_indices = @transform_2, window_bounds = array<i64: 8, 4>}, {pipeline_mode = #tpu.pipeline_mode<synchronous>, transform_indices = @transform_3, window_bounds = array<i64: 4, 4>}, {pipeline_mode = #tpu.pipeline_mode<synchronous>, transform_indices = @transform_4, window_bounds = array<i64: 1, 4>}, {transform_indices = @transform_5, window_bounds = array<i64: 2, 8, 4>}]} {
    %c0 = arith.constant 0 : index
    %c0_0 = arith.constant 0 : index
    %c0_1 = arith.constant 0 : index
    %0 = vector.load %arg2[%c0, %c0_0, %c0_1] : memref<2x8x8xf32, #tpu.memory_space<vmem>>, vector<2x8x8xf32>
    %1 = vector.shape_cast %0 : vector<2x8x8xf32> to vector<16x8xf32>
    %2 = vector.extract_strided_slice %1 {offsets = [0, 4], sizes = [16, 4], strides = [1, 1]} : vector<16x8xf32> to vector<16x4xf32>
    %c1_i32 = arith.constant 1 : i32
    %3 = tpu.dynamic_rotate %2 by %c1_i32 dim 0 : vector<16x4xf32>, i32 -> vector<16x4xf32>
    %4 = vector.shape_cast %3 : vector<16x4xf32> to vector<2x8x4xf32>
    %c0_2 = arith.constant 0 : index
    %c7 = arith.constant 7 : index
    %c0_3 = arith.constant 0 : index
    %5 = vector.load %arg3[%c0_2, %c7, %c0_3] : memref<2x8x8xf32, #tpu.memory_space<vmem>>, vector<2x1x8xf32>
    %6 = vector.extract_strided_slice %5 {offsets = [0, 0, 4], sizes = [2, 1, 4], strides = [1, 1, 1]} : vector<2x1x8xf32> to vector<2x1x4xf32>
    %c0_i32 = arith.constant 0 : i32
    %7 = arith.cmpi sgt, %arg1, %c0_i32 : i32
    %cst = arith.constant 0.000000e+00 : f32
    %8 = vector.broadcast %cst : f32 to vector<2x1x4xf32>
    %9 = arith.select %7, %6, %8 : vector<2x1x4xf32>
    %10 = tpu.iota {dimensions = array<i32: 1>} : vector<2x8x4xi32>
    %c0_i32_4 = arith.constant 0 : i32
    %11 = vector.broadcast %c0_i32_4 : i32 to vector<2x8x4xi32>
    %12 = arith.cmpi eq, %10, %11 : vector<2x8x4xi32>
    %13 = vector.shape_cast %9 : vector<2x1x4xf32> to vector<2x1x4xf32>
    %14 = vector.broadcast %13 : vector<2x1x4xf32> to vector<2x8x4xf32>
    %15 = arith.select %12, %14, %4 : vector<2x8x4xi1>, vector<2x8x4xf32>
    %c0_5 = arith.constant 0 : index
    %c0_6 = arith.constant 0 : index
    %16 = vector.load %arg4[%c0_5, %c0_6] : memref<8x4xf32, #tpu.memory_space<vmem>>, vector<8x4xf32>
    %cst_7 = arith.constant dense<0.000000e+00> : vector<16x4xf32>
    %17 = tpu.matmul %1, %16, %cst_7 {dimension_numbers = #tpu.dot_dimension_numbers<[1], [0], [0], [1], [0, 0, 1, 1], [], []>} : vector<16x8xf32>, vector<8x4xf32>, vector<16x4xf32> -> vector<16x4xf32>
    %18 = vector.shape_cast %15 : vector<2x8x4xf32> to vector<16x4xf32>
    %c0_8 = arith.constant 0 : index
    %c0_9 = arith.constant 0 : index
    %19 = vector.load %arg5[%c0_8, %c0_9] : memref<4x4xf32, #tpu.memory_space<vmem>>, vector<4x4xf32>
    %cst_10 = arith.constant dense<0.000000e+00> : vector<16x4xf32>
    %20 = tpu.matmul %18, %19, %cst_10 {dimension_numbers = #tpu.dot_dimension_numbers<[1], [0], [0], [1], [0, 0, 1, 1], [], []>} : vector<16x4xf32>, vector<4x4xf32>, vector<16x4xf32> -> vector<16x4xf32>
    %21 = arith.addf %17, %20 : vector<16x4xf32>
    %c0_11 = arith.constant 0 : index
    %c0_12 = arith.constant 0 : index
    %22 = vector.load %arg6[%c0_11, %c0_12] : memref<1x4xf32, #tpu.memory_space<vmem>>, vector<1x4xf32>
    %23 = vector.broadcast %22 : vector<1x4xf32> to vector<16x4xf32>
    %24 = arith.addf %21, %23 : vector<16x4xf32>
    %25 = vector.shape_cast %24 : vector<16x4xf32> to vector<2x8x4xf32>
    %c0_13 = arith.constant 0 : index
    %c0_14 = arith.constant 0 : index
    %c0_15 = arith.constant 0 : index
    %26 = vector.load %arg7[%c0_13, %c0_14, %c0_15] : memref<2x8x4xf32, #tpu.memory_space<vmem>>, vector<2x8x4xf32>
    tpu.vector_store %arg7[%c0_13, %c0_14, %c0_15], %25 {strides = array<i32>} : memref<2x8x4xf32, #tpu.memory_space<vmem>>, vector<2x8x4xf32>,
    return
  }
  func.func @transform_0(%arg0: i32, %arg1: i32) -> (i32, i32, i32) {
    %c0_i32 = arith.constant 0 : i32
    %c0_i32_0 = arith.constant 0 : i32
    return %arg0, %arg1, %c0_i32 : i32, i32, i32
  }
  func.func @transform_1(%arg0: i32, %arg1: i32) -> (i32, i32, i32) {
    %c1_i32 = arith.constant 1 : i32
    %0 = arith.muli %arg1, %c1_i32 : i32
    %c1_i32_0 = arith.constant 1 : i32
    %1 = arith.subi %0, %c1_i32_0 : i32
    %c0_i32 = arith.constant 0 : i32
    %2 = arith.maxsi %1, %c0_i32 : i32
    %c0_i32_1 = arith.constant 0 : i32
    %c0_i32_2 = arith.constant 0 : i32
    return %arg0, %2, %c0_i32_1 : i32, i32, i32
  }
  func.func @transform_2(%arg0: i32, %arg1: i32) -> (i32, i32) {
    %c0_i32 = arith.constant 0 : i32
    %c0_i32_0 = arith.constant 0 : i32
    %c0_i32_1 = arith.constant 0 : i32
    return %c0_i32, %c0_i32_0 : i32, i32
  }
  func.func @transform_3(%arg0: i32, %arg1: i32) -> (i32, i32) {
    %c0_i32 = arith.constant 0 : i32
    %c0_i32_0 = arith.constant 0 : i32
    %c0_i32_1 = arith.constant 0 : i32
    return %c0_i32, %c0_i32_0 : i32, i32
  }
  func.func @transform_4(%arg0: i32, %arg1: i32) -> (i32, i32) {
    %c0_i32 = arith.constant 0 : i32
    %c0_i32_0 = arith.constant 0 : i32
    %c0_i32_1 = arith.constant 0 : i32
    return %c0_i32, %c0_i32_0 : i32, i32
  }
  func.func @transform_5(%arg0: i32, %arg1: i32) -> (i32, i32, i32) {
    %c0_i32 = arith.constant 0 : i32
    %c0_i32_0 = arith.constant 0 : i32
    return %arg0, %arg1, %c0_i32 : i32, i32, i32
  }
}

</mosaic_0001>

<llo_original>
// kernel: _lambda_.1
$region0: #{_lambda_.1}
  #allocation0 [shape = 'u32[]', space=smem, size = 0x4, offset = 0x4, fixed_abs, tag = 'smem constant byte address 0x4 - core index']
  #allocation1 [shape = 'u32[144,128]{1,0:T(1,128)}', space=vmem, size = 0x12000, scoped, tag = 'internal scratch']
  %s0 = inlined_call_operand.vmem [shape: f32[2,8,8], index: 0, kind: input, shape index: {}, may-alias: {0,1}]
  %s1 = inlined_call_operand.vmem [shape: f32[2,8,8], index: 1, kind: input, shape index: {}, may-alias: {0,1}]
  %s2 = inlined_call_operand.vmem [shape: f32[8,4], index: 2, kind: input, shape index: {}]
  %s3 = inlined_call_operand.vmem [shape: f32[4,4], index: 3, kind: input, shape index: {}]
  %s4 = inlined_call_operand.vmem [shape: f32[1,4], index: 4, kind: input, shape index: {}]
  %s5 = inlined_call_operand.vmem [shape: f32[2,8,4], index: 5, kind: output, shape index: {}]
  %s6 = sld [smem:[#allocation0]]
  $region30: #{_lambda_.1} parent=0
    _
  %s8 = ssub.s32 1, %s6
  %s9 = scalar_select 0, %s8, %s6
  // Predicated region
  $region2: #{_lambda_.1} parent=0 // pred_check
    _
  $region3: #{_lambda_.1} parent=0 // pred_check_branch
    %11 = sbr.rel (0) target = $region5
  $region4: #{_lambda_.1} parent=0 // pred_region
    _
  $region5: #{_lambda_.1} parent=0 // pred_fallthru
    _
  // Predicated region
  $region6: #{_lambda_.1} parent=0 // pred_check
    _
  $region7: #{_lambda_.1} parent=0 // pred_check_branch
    %13 = sbr.rel (0) target = $region9
  $region8: #{_lambda_.1} parent=0 // pred_region
    %s14 = ssub.s32 0, 1
    %p15 = scmp.gt.s32.totalorder %s14, 0
    %s16 = scalar_select %p15, %s14, 0
    %p17 = scmp.lt.s32.totalorder %s16, 0
    %s18 = scalar_select %p17, %s16, 0
    %s19 = smul.addr %s18, 8
    %s20 = scalar_lea.vmem %s1, %s19
    %s21 = ssub.s32 0, 1
    %p22 = scmp.gt.s32.totalorder %s21, 0
    %s23 = scalar_select %p22, %s21, 0
  $region9: #{_lambda_.1} parent=0 // pred_fallthru
    _
  // Predicated region
  $region10: #{_lambda_.1} parent=0 // pred_check
    _
  $region11: #{_lambda_.1} parent=0 // pred_check_branch
    %25 = sbr.rel (0) target = $region13
  $region12: #{_lambda_.1} parent=0 // pred_region
    _
  $region13: #{_lambda_.1} parent=0 // pred_fallthru
    _
  // Predicated region
  $region14: #{_lambda_.1} parent=0 // pred_check
    _
  $region15: #{_lambda_.1} parent=0 // pred_check_branch
    %27 = sbr.rel (0) target = $region17
  $region16: #{_lambda_.1} parent=0 // pred_region
    _
  $region17: #{_lambda_.1} parent=0 // pred_fallthru
    _
  // Predicated region
  $region18: #{_lambda_.1} parent=0 // pred_check
    _
  $region19: #{_lambda_.1} parent=0 // pred_check_branch
    %29 = sbr.rel (0) target = $region21
  $region20: #{_lambda_.1} parent=0 // pred_region
    _
  $region21: #{_lambda_.1} parent=0 // pred_fallthru
    _
  %s30 = ssub.s32 0, 1
  %p31 = scmp.gt.s32.totalorder %s30, 0
  %s32 = scalar_select %p31, %s30, 0
  %p33 = scmp.lt.s32.totalorder %s32, 0
  %s34 = scalar_select %p33, %s32, 0
  %s35 = smul.addr %s34, 8
  %s36 = scalar_lea.vmem %s1, %s35
  %s37 = ssub.s32 0, 1
  %p38 = scmp.gt.s32.totalorder %s37, 0
  %s39 = scalar_select %p38, %s37, 0
  %p40 = scmp.lt.s32.totalorder %s39, 0
  %s41 = scalar_select %p40, %s39, 0
  %s42 = smul.addr %s41, 8
  %s43 = scalar_lea.vmem %s1, %s42
  %s44 = ssub.s32 0, 1
  %p45 = scmp.gt.s32.totalorder %s44, 0
  %s46 = scalar_select %p45, %s44, 0
  %v47 = vld [vmem:[%s0] sm:$0xff]
  %v48 = vld [vmem:[%s0 + $0x8] sm:$0xff]
  %51 = vrot.lane.b32.xlu0 %v47, 124
  %v52 = vpop.permute.xlu0 %51
  %53 = vrot.lane.b32.xlu0 %v48, 124
  %v54 = vpop.permute.xlu0 %53
  %v57 = vrot.slane %v52, 7
  %v58 = vrot.slane %v54, 7
  %v59 = vlaneseq
  %v60 = vshrl.u32 %v59, 7
  %vm61 = vcmp.lt.s32.totalorder %v60, 1
  %v62 = vsel %vm61, %v57, %v58
  %v63 = vsel %vm61, %v58, %v57
  %v64 = vld [vmem:[%s43 + $0x7] sm:$0x1]
  %v65 = vld [vmem:[%s43 + $0xf] sm:$0x1]
  %p66 = scmp.gt.s32.totalorder 0, 0
  %s67 = scalar_select %p66, 1, 0
  %v68 = vstv %s67
  %vm69 = vcmp.eq.s32.totalorder %v68, 1
  %v70 = vsel %vm69, %v64, 0.0
  %v71 = vsel %vm69, %v65, 0.0
  %vm72 = vcmp.eq.s32.totalorder %v60, 0
  %v73 = vlaneseq
  %v74 = vshrl.u32 %v73, 7
  %v75 = vsub.s32 0, %v74
  %v76 = vrot.slane %v70, %v75
  %v77 = vlaneseq
  %v78 = vshrl.u32 %v77, 7
  %v79 = vsub.s32 0, %v78
  %v80 = vrot.slane %v71, %v79
  %83 = vrot.lane.b32.xlu0 %v63, 4
  %v84 = vpop.permute.xlu0 %83
  %85 = vrot.lane.b32.xlu0 %v62, 4
  %v86 = vpop.permute.xlu0 %85
  %v89 = vsel %vm72, %v76, %v84
  %v90 = vsel %vm72, %v80, %v86
  %v91 = vld [vmem:[%s2] sm:$0xff]
  %v92 = vld [vmem:[%s3] sm:$0xf]
  %95 = vrot.lane.b32.xlu0 %v89, 124
  %v96 = vpop.permute.xlu0 %95
  %97 = vrot.lane.b32.xlu0 %v90, 124
  %v98 = vpop.permute.xlu0 %97
  %vm99 = vcmask 31744
  %v100 = vsel %vm99, %v96, 0
  %v102 = vsel %vm99, %v98, 0
  %vm104 = vcmask 1043456
  %v106 = vsel %vm104, %v92, 0
  %108 = vmatprep.subr.mxu0 0.0
  %109 = vmatpush1.msra.mxu0 0.0
  %110 = vmatprep.subr.mxu0 0.0
  %111 = vmatpush1.msra.mxu0 0.0
  %112 = vmatprep.subr.mxu0 0.0
  %113 = vmatpush1.msra.mxu0 0.0
  %114 = vmatprep.subr.mxu0 0.0
  %115 = vmatpush1.msra.mxu0 0.0
  %116 = vmatprep.subr.mxu0 0.0
  %117 = vmatpush1.msra.mxu0 0.0
  %118 = vmatprep.subr.mxu0 0.0
  %119 = vmatpush1.msra.mxu0 0.0
  %120 = vmatprep.subr.mxu0 0.0
  %121 = vmatpush1.msra.mxu0 0.0
  %122 = vmatprep.subr.mxu0 0.0
  %123 = vmatpush1.msra.mxu0 0.0
  %124 = vmatprep.subr.mxu0 0.0
  %125 = vmatpush1.msra.mxu0 0.0
  %126 = vmatprep.subr.mxu0 0.0
  %127 = vmatpush1.msra.mxu0 0.0
  %128 = vmatprep.subr.mxu0 0.0
  %129 = vmatpush1.msra.mxu0 0.0
  %130 = vmatprep.subr.mxu0 0.0
  %131 = vmatpush1.msra.mxu0 0.0
  %132 = vmatprep.subr.mxu0 0.0
  %133 = vmatpush1.msra.mxu0 0.0
  %134 = vmatprep.subr.mxu0 0.0
  %135 = vmatpush1.msra.mxu0 0.0
  %136 = vmatprep.subr.mxu0 0.0
  %137 = vmatpush1.msra.mxu0 0.0
  %138 = vmatprep.subr.mxu0 0.0
  %139 = vmatpush1.msra.mxu0 %v106
  %140 = vmatprep.subr.mxu0 0.0
  %141 = vmatpush2.msra.mxu0 0.0
  %142 = vmatprep.subr.mxu0 0.0
  %143 = vmatpush2.msra.mxu0 0.0
  %144 = vmatprep.subr.mxu0 0.0
  %145 = vmatpush2.msra.mxu0 0.0
  %146 = vmatprep.subr.mxu0 0.0
  %147 = vmatpush2.msra.mxu0 0.0
  %148 = vmatprep.subr.mxu0 0.0
  %149 = vmatpush2.msra.mxu0 0.0
  %150 = vmatprep.subr.mxu0 0.0
  %151 = vmatpush2.msra.mxu0 0.0
  %152 = vmatprep.subr.mxu0 0.0
  %153 = vmatpush2.msra.mxu0 0.0
  %154 = vmatprep.subr.mxu0 0.0
  %155 = vmatpush2.msra.mxu0 0.0
  %156 = vmatprep.subr.mxu0 0.0
  %157 = vmatpush2.msra.mxu0 0.0
  %158 = vmatprep.subr.mxu0 0.0
  %159 = vmatpush2.msra.mxu0 0.0
  %160 = vmatprep.subr.mxu0 0.0
  %161 = vmatpush2.msra.mxu0 0.0
  %162 = vmatprep.subr.mxu0 0.0
  %163 = vmatpush2.msra.mxu0 0.0
  %164 = vmatprep.subr.mxu0 0.0
  %165 = vmatpush2.msra.mxu0 0.0
  %166 = vmatprep.subr.mxu0 0.0
  %167 = vmatpush2.msra.mxu0 0.0
  %168 = vmatprep.subr.mxu0 0.0
  %169 = vmatpush2.msra.mxu0 0.0
  %170 = vmatprep.subr.mxu0 0.0
  %171 = vmatpush2.msra.mxu0 0.0
  %172 = vmatprep.mubr.f32.mxu0 0.0
  %173 = vmatmul.mubr.f32.gmra.mxu0 %v100
  %v174 = vpop.f32.mrf.mxu0
  %v175 = vadd.f32 0.0, %v174
  %v176 = vpop.f32.mrf.mxu0
  %177 = vmatprep.mubr.f32.mxu0 0.0
  %178 = vmatmul.mubr.f32.gmra.mxu0 %v102
  %v179 = vpop.f32.mrf.mxu0
  %v180 = vadd.f32 0.0, %v179
  %v181 = vpop.f32.mrf.mxu0
  %182 = vdwg.mxu0
  %vm183 = vcmask 64512
  %v184 = vsel %vm183, %v47, 0
  %v186 = vsel %vm183, %v48, 0
  %188 = vmatprep.subr.mxu0 0.0
  %189 = vmatpush1.msra.mxu0 0.0
  %190 = vmatprep.subr.mxu0 0.0
  %191 = vmatpush1.msra.mxu0 0.0
  %192 = vmatprep.subr.mxu0 0.0
  %193 = vmatpush1.msra.mxu0 0.0
  %194 = vmatprep.subr.mxu0 0.0
  %195 = vmatpush1.msra.mxu0 0.0
  %196 = vmatprep.subr.mxu0 0.0
  %197 = vmatpush1.msra.mxu0 0.0
  %198 = vmatprep.subr.mxu0 0.0
  %199 = vmatpush1.msra.mxu0 0.0
  %200 = vmatprep.subr.mxu0 0.0
  %201 = vmatpush1.msra.mxu0 0.0
  %202 = vmatprep.subr.mxu0 0.0
  %203 = vmatpush1.msra.mxu0 0.0
  %204 = vmatprep.subr.mxu0 0.0
  %205 = vmatpush1.msra.mxu0 0.0
  %206 = vmatprep.subr.mxu0 0.0
  %207 = vmatpush1.msra.mxu0 0.0
  %208 = vmatprep.subr.mxu0 0.0
  %209 = vmatpush1.msra.mxu0 0.0
  %210 = vmatprep.subr.mxu0 0.0
  %211 = vmatpush1.msra.mxu0 0.0
  %212 = vmatprep.subr.mxu0 0.0
  %213 = vmatpush1.msra.mxu0 0.0
  %214 = vmatprep.subr.mxu0 0.0
  %215 = vmatpush1.msra.mxu0 0.0
  %216 = vmatprep.subr.mxu0 0.0
  %217 = vmatpush1.msra.mxu0 0.0
  %218 = vmatprep.subr.mxu0 0.0
  %219 = vmatpush1.msra.mxu0 %v91
  %220 = vmatprep.subr.mxu0 0.0
  %221 = vmatpush2.msra.mxu0 0.0
  %222 = vmatprep.subr.mxu0 0.0
  %223 = vmatpush2.msra.mxu0 0.0
  %224 = vmatprep.subr.mxu0 0.0
  %225 = vmatpush2.msra.mxu0 0.0
  %226 = vmatprep.subr.mxu0 0.0
  %227 = vmatpush2.msra.mxu0 0.0
  %228 = vmatprep.subr.mxu0 0.0
  %229 = vmatpush2.msra.mxu0 0.0
  %230 = vmatprep.subr.mxu0 0.0
  %231 = vmatpush2.msra.mxu0 0.0
  %232 = vmatprep.subr.mxu0 0.0
  %233 = vmatpush2.msra.mxu0 0.0
  %234 = vmatprep.subr.mxu0 0.0
  %235 = vmatpush2.msra.mxu0 0.0
  %236 = vmatprep.subr.mxu0 0.0
  %237 = vmatpush2.msra.mxu0 0.0
  %238 = vmatprep.subr.mxu0 0.0
  %239 = vmatpush2.msra.mxu0 0.0
  %240 = vmatprep.subr.mxu0 0.0
  %241 = vmatpush2.msra.mxu0 0.0
  %242 = vmatprep.subr.mxu0 0.0
  %243 = vmatpush2.msra.mxu0 0.0
  %244 = vmatprep.subr.mxu0 0.0
  %245 = vmatpush2.msra.mxu0 0.0
  %246 = vmatprep.subr.mxu0 0.0
  %247 = vmatpush2.msra.mxu0 0.0
  %248 = vmatprep.subr.mxu0 0.0
  %249 = vmatpush2.msra.mxu0 0.0
  %250 = vmatprep.subr.mxu0 0.0
  %251 = vmatpush2.msra.mxu0 0.0
  %252 = vmatprep.mubr.f32.mxu0 0.0
  %253 = vmatmul.mubr.f32.gmra.mxu0 %v184
  %v254 = vpop.f32.mrf.mxu0
  %v255 = vadd.f32 %v175, %v254
  %v256 = vpop.f32.mrf.mxu0
  %257 = vmatprep.mubr.f32.mxu0 0.0
  %258 = vmatmul.mubr.f32.gmra.mxu0 %v186
  %v259 = vpop.f32.mrf.mxu0
  %v260 = vadd.f32 %v180, %v259
  %v261 = vpop.f32.mrf.mxu0
  %262 = vdwg.mxu0
  %v263 = vld [vmem:[%s4] sm:$0x1]
  %v265 = vlaneseq
  %v266 = vshrl.u32 %v265, 7
  %v267 = vsub.s32 0, %v266
  %v268 = vrot.slane %v263, %v267
  %v270 = vadd.f32 %v255, %v268
  %v271 = vadd.f32 %v260, %v268
  %272 = vst.msk [vmem:[%s5] sm:$0xff] %vm99, %v270
  %273 = vst.msk [vmem:[%s5 + $0x8] sm:$0xff] %vm99, %v271
  // Predicated region
  $region22: #{_lambda_.1} parent=0 // pred_check
    _
  $region23: #{_lambda_.1} parent=0 // pred_check_branch
    %275 = sbr.rel (0) target = $region25
  $region24: #{_lambda_.1} parent=0 // pred_region
    _
  $region25: #{_lambda_.1} parent=0 // pred_fallthru
    _
  // Predicated region
  $region26: #{_lambda_.1} parent=0 // pred_check
    _
  $region27: #{_lambda_.1} parent=0 // pred_check_branch
    %277 = sbr.rel (0) target = $region29
  $region28: #{_lambda_.1} parent=0 // pred_region
    _
  $region29: #{_lambda_.1} parent=0 // pred_fallthru
    _

</llo_original>
